<compile_context>
chip_gen: v7x
topology: tpu7x:2x2x1
jax: 0.10.0
libtpu: 0.0.40
codegen_flags: <defaults>
</compile_context>

<pallas_src>
import functools

import jax
import jax.numpy as jnp
from jax.experimental import pallas as pl
from jax.experimental.pallas import tpu as pltpu


NEG_SLOPE = 0.01  # nn.LeakyReLU() default negative_slope


def _leaky_relu(x):
    # For 0 < slope < 1: leaky_relu(x) == max(x, slope*x). 2 VALU ops (mul+max)
    # instead of 3 (mul+cmp+select); matters on v5e's f32-only VPU.
    return jnp.maximum(x, NEG_SLOPE * x)


def mlp_kernel(x_ref, w1_ref, b1_ref, w2_ref, b2_ref, w3_ref, b3_ref, o_ref,
               *, mm_dtype):
    # x_ref: (tb, D); w1: (D, 256); w2: (256, 128); w3: (1, 128) row; b3: (1, 1) in SMEM.
    # o_ref: (1, tb)  -- lane-dense output row for this batch tile.
    x = x_ref[...].astype(mm_dtype)
    h1 = jnp.dot(x, w1_ref[...].astype(mm_dtype),
                 preferred_element_type=jnp.float32)
    h1 = _leaky_relu(h1 + b1_ref[...])                       # f32 bias + activation
    h2 = jnp.dot(h1.astype(mm_dtype), w2_ref[...].astype(mm_dtype),
                 preferred_element_type=jnp.float32)
    h2 = _leaky_relu(h2 + b2_ref[...])
    # fc3 has a single output unit: VPU multiply + XLU lane reduce (keeps it off the MXU
    # and avoids a masked single-lane store).
    h3 = jnp.sum(h2 * w3_ref[...], axis=-1)                  # (tb,)
    o_ref[...] = (h3.reshape(1, -1) + b3_ref[0, 0]).astype(o_ref.dtype)


def _round_up(x, m):
    return ((x + m - 1) // m) * m


def speech_model_forward(x, params, *, tb=1024, mm_dtype=jnp.bfloat16):
    """x: (B, input_size) float32. Returns (B, 1) float32."""
    w1, b1, w2, b2, w3, b3 = params
    B, D = x.shape
    H1 = w1.shape[1]   # 256
    H2 = w2.shape[1]   # 128

    # Effective batch tile:
    #  - tiny batches: one tile covering the whole (8-rounded) batch,
    #  - larger batches: multiple of 128, capped at ceil(B/2) rounded to 128 so the
    #    parallel batch axis always has >=2 grid steps (both v7x TensorCores used).
    if B <= 256:
        tb_eff = max(8, _round_up(B, 8))
    else:
        assert tb % 128 == 0, "tb must be a multiple of 128 for multi-step grids"
        tb_eff = max(128, min(tb, _round_up(pl.cdiv(B, 2), 128)))
    Bp = _round_up(B, tb_eff)
    if Bp != B:
        x = jnp.pad(x, ((0, Bp - B), (0, 0)))  # zero rows are harmless; sliced off below
    grid = (Bp // tb_eff,)

    # Scoped-VMEM limit: weights + double-buffered x tile / out row + f32 intermediates,
    # with 2x safety margin. Keeps large tiles legal on v5e (16 MiB default scoped limit)
    # without exceeding v7x's 64 MiB physical VMEM.
    weight_bytes = (D * H1 + H1 * H2 + H2) * 4 + (H1 + H2 + 1) * 4
    per_step_bytes = (2 * tb_eff * D * 4       # double-buffered x tiles
                      + 2 * tb_eff * 4         # double-buffered (1, tb) output row
                      + tb_eff * (H1 + H2) * 4)  # f32 h1/h2 intermediates
    vmem_limit = int(min(100 * 2**20, max(32 * 2**20, 2 * (per_step_bytes + weight_bytes))))

    cost = pl.CostEstimate(
        flops=2 * Bp * (D * H1 + H1 * H2 + H2),
        transcendentals=0,
        bytes_accessed=Bp * (D * 4 + 4) + weight_bytes,
    )

    full = lambda r, c: pl.BlockSpec((r, c), lambda i: (0, 0))  # grid-invariant block

    kernel = functools.partial(mlp_kernel, mm_dtype=mm_dtype)

    out_row = pl.pallas_call(
        kernel,
        out_shape=jax.ShapeDtypeStruct((1, Bp), jnp.float32),
        grid_spec=pl.GridSpec(
            grid=grid,
            in_specs=[
                pl.BlockSpec((tb_eff, D), lambda i: (i, 0)),   # x tile (batch-tiled)
                full(D, H1), full(1, H1),                      # fc1 weight + bias
                full(H1, H2), full(1, H2),                     # fc2 weight + bias
                full(1, H2),                                   # fc3 weight row
                pl.BlockSpec(memory_space=pltpu.MemorySpace.SMEM),  # fc3 bias scalar
            ],
            out_specs=pl.BlockSpec((1, tb_eff), lambda i: (0, i)),
        ),
        compiler_params=pltpu.CompilerParams(
            dimension_semantics=("parallel",),
            vmem_limit_bytes=vmem_limit,
        ),
        cost_estimate=cost,
    )(x, w1, b1, w2, b2, w3, b3)

    # (1, Bp) lane-dense row -> (B, 1) column, dropping padded rows.
    return out_row.reshape(Bp, 1)[:B]


def xavier_uniform(key, shape, fan_in, fan_out):
    # Matches nn.init.xavier_uniform_ (gain=1): U(-a, a), a = sqrt(6/(fan_in+fan_out)).
    a = (6.0 / (fan_in + fan_out)) ** 0.5
    return jax.random.uniform(key, shape, jnp.float32, -a, a)


def init_params(key, input_size):
    k1, k2, k3, kb1, kb2, kb3 = jax.random.split(key, 6)

    def bias(k, fan_in, fan_out):
        # PyTorch nn.Linear default bias init: U(-1/sqrt(fan_in), 1/sqrt(fan_in)).
        bnd = 1.0 / (fan_in ** 0.5)
        return jax.random.uniform(k, (1, fan_out), jnp.float32, -bnd, bnd)

    # w1, w2 stored transposed (in, out); w3 kept as PyTorch's (out=1, in=128) row.
    w1 = xavier_uniform(k1, (input_size, 256), input_size, 256)
    b1 = bias(kb1, input_size, 256)
    w2 = xavier_uniform(k2, (256, 128), 256, 128)
    b2 = bias(kb2, 256, 128)
    w3 = xavier_uniform(k3, (1, 128), 128, 1)
    b3 = bias(kb3, 128, 1)   # (1, 1)
    return (w1, b1, w2, b2, w3, b3)


def reference_forward(x, params, mm_dtype=jnp.float32):
    """Pure-JAX reference. mm_dtype mirrors the kernel's matmul-operand cast."""
    w1, b1, w2, b2, w3, b3 = params
    h = jnp.dot(x.astype(mm_dtype), w1.astype(mm_dtype),
                preferred_element_type=jnp.float32) + b1
    h = _leaky_relu(h)
    h = jnp.dot(h.astype(mm_dtype), w2.astype(mm_dtype),
                preferred_element_type=jnp.float32) + b2
    h = _leaky_relu(h)
    return h @ w3.T + b3


if __name__ == "__main__":
    key = jax.random.PRNGKey(0)
    kx, kp, kx2 = jax.random.split(key, 3)

    input_size = 32
    params = init_params(kp, input_size)

    # Small single-tile case, full-f32 path: tight tolerance vs reference.
    batch = 8
    x = jax.random.normal(kx, (batch, input_size), jnp.float32)
    out_f32 = jax.block_until_ready(
        speech_model_forward(x, params, mm_dtype=jnp.float32))
    ref_f32 = reference_forward(x, params, mm_dtype=jnp.float32)
    assert out_f32.shape == (batch, 1), out_f32.shape
    assert jnp.allclose(out_f32, ref_f32, atol=1e-5, rtol=1e-5), "mismatch (f32 small)"

    # Same small case on the default bf16-operand path (f32 accumulation).
    out_bf = jax.block_until_ready(speech_model_forward(x, params))
    ref_bf = reference_forward(x, params, mm_dtype=jnp.bfloat16)
    assert jnp.allclose(out_bf, ref_bf, atol=1e-3, rtol=1e-3), "mismatch (bf16 small)"
    assert jnp.allclose(out_bf, ref_f32, atol=5e-2, rtol=5e-2), "bf16 drifted from f32"

    # Multi-tile + padding case (grid > 1, lane-dense output path, Bp/2 tile cap).
    batch2 = 300
    x2 = jax.random.normal(kx2, (batch2, input_size), jnp.float32)
    out2 = jax.block_until_ready(speech_model_forward(x2, params, tb=1024))
    ref2 = reference_forward(x2, params, mm_dtype=jnp.bfloat16)
    ref2_f32 = reference_forward(x2, params, mm_dtype=jnp.float32)
    assert out2.shape == (batch2, 1), out2.shape
    assert jnp.allclose(out2, ref2, atol=1e-3, rtol=1e-3), "mismatch (bf16 tiled)"
    assert jnp.allclose(out2, ref2_f32, atol=5e-2, rtol=5e-2), "bf16 drifted (tiled)"

    print("KERNEL_OK")
</pallas_src>

<mosaic_0001>
module attributes {stable_mosaic.version = 11 : i64} {
  func.func @mlp_kernel(%arg0: i32, %arg1: memref<8x32xf32, #tpu.memory_space<vmem>>, %arg2: memref<32x256xf32, #tpu.memory_space<vmem>>, %arg3: memref<1x256xf32, #tpu.memory_space<vmem>>, %arg4: memref<256x128xf32, #tpu.memory_space<vmem>>, %arg5: memref<1x128xf32, #tpu.memory_space<vmem>>, %arg6: memref<1x128xf32, #tpu.memory_space<vmem>>, %arg7: memref<1x1xf32, #tpu.memory_space<smem>>, %arg8: memref<1x8xf32, #tpu.memory_space<vmem>>) attributes {dimension_semantics = [#tpu.dimension_semantics<parallel>], iteration_bounds = array<i64: 1>, scalar_prefetch = 0 : i64, scratch_operands = 0 : i64, tpu.core_type = #tpu.core_type<tc>, window_params = [{transform_indices = @transform_0, window_bounds = array<i64: 8, 32>}, {pipeline_mode = #tpu.pipeline_mode<synchronous>, transform_indices = @transform_1, window_bounds = array<i64: 32, 256>}, {pipeline_mode = #tpu.pipeline_mode<synchronous>, transform_indices = @transform_2, window_bounds = array<i64: 1, 256>}, {pipeline_mode = #tpu.pipeline_mode<synchronous>, transform_indices = @transform_3, window_bounds = array<i64: 256, 128>}, {pipeline_mode = #tpu.pipeline_mode<synchronous>, transform_indices = @transform_4, window_bounds = array<i64: 1, 128>}, {pipeline_mode = #tpu.pipeline_mode<synchronous>, transform_indices = @transform_5, window_bounds = array<i64: 1, 128>}, {transform_indices = @transform_6, window_bounds = array<i64: 1, 1>}, {transform_indices = @transform_7, window_bounds = array<i64: 1, 8>}]} {
    %c0 = arith.constant 0 : index
    %c0_0 = arith.constant 0 : index
    %0 = vector.load %arg1[%c0, %c0_0] : memref<8x32xf32, #tpu.memory_space<vmem>>, vector<8x32xf32>
    %c0_1 = arith.constant 0 : index
    %c0_2 = arith.constant 0 : index
    %1 = vector.load %arg2[%c0_1, %c0_2] : memref<32x256xf32, #tpu.memory_space<vmem>>, vector<32x256xf32>
    %cst = arith.constant dense<0.000000e+00> : vector<8x256xf32>
    %2 = tpu.matmul %0, %1, %cst {dimension_numbers = #tpu.dot_dimension_numbers<[1], [0], [0], [1], [0, 0, 1, 1], [], []>} : vector<8x32xf32>, vector<32x256xf32>, vector<8x256xf32> -> vector<8x256xf32>
    %c0_3 = arith.constant 0 : index
    %c0_4 = arith.constant 0 : index
    %3 = vector.load %arg3[%c0_3, %c0_4] : memref<1x256xf32, #tpu.memory_space<vmem>>, vector<1x256xf32>
    %4 = vector.broadcast %3 : vector<1x256xf32> to vector<8x256xf32>
    %5 = arith.addf %2, %4 : vector<8x256xf32>
    %cst_5 = arith.constant 0.00999999977 : f32
    %6 = vector.broadcast %cst_5 : f32 to vector<8x256xf32>
    %7 = arith.mulf %6, %5 : vector<8x256xf32>
    %8 = arith.maximumf %5, %7 : vector<8x256xf32>
    %c0_6 = arith.constant 0 : index
    %c0_7 = arith.constant 0 : index
    %9 = vector.load %arg4[%c0_6, %c0_7] : memref<256x128xf32, #tpu.memory_space<vmem>>, vector<256x128xf32>
    %cst_8 = arith.constant dense<0.000000e+00> : vector<8x128xf32>
    %10 = tpu.matmul %8, %9, %cst_8 {dimension_numbers = #tpu.dot_dimension_numbers<[1], [0], [0], [1], [0, 0, 1, 1], [], []>} : vector<8x256xf32>, vector<256x128xf32>, vector<8x128xf32> -> vector<8x128xf32>
    %c0_9 = arith.constant 0 : index
    %c0_10 = arith.constant 0 : index
    %11 = vector.load %arg5[%c0_9, %c0_10] : memref<1x128xf32, #tpu.memory_space<vmem>>, vector<1x128xf32>
    %12 = vector.broadcast %11 : vector<1x128xf32> to vector<8x128xf32>
    %13 = arith.addf %10, %12 : vector<8x128xf32>
    %cst_11 = arith.constant 0.00999999977 : f32
    %14 = vector.broadcast %cst_11 : f32 to vector<8x128xf32>
    %15 = arith.mulf %14, %13 : vector<8x128xf32>
    %16 = arith.maximumf %13, %15 : vector<8x128xf32>
    %c0_12 = arith.constant 0 : index
    %c0_13 = arith.constant 0 : index
    %17 = vector.load %arg6[%c0_12, %c0_13] : memref<1x128xf32, #tpu.memory_space<vmem>>, vector<1x128xf32>
    %18 = vector.broadcast %17 : vector<1x128xf32> to vector<8x128xf32>
    %19 = arith.mulf %16, %18 : vector<8x128xf32>
    %cst_14 = arith.constant dense<0.000000e+00> : vector<8xf32>
    %20 = vector.multi_reduction <add>, %19, %cst_14 [1] : vector<8x128xf32> to vector<8xf32>
    %21 = vector.shape_cast %20 : vector<8xf32> to vector<1x8xf32>
    %c0_15 = arith.constant 0 : index
    %c0_16 = arith.constant 0 : index
    %22 = memref.load %arg7[%c0_15, %c0_16] : memref<1x1xf32, #tpu.memory_space<smem>>
    %23 = vector.broadcast %22 : f32 to vector<1x8xf32>
    %24 = arith.addf %21, %23 : vector<1x8xf32>
    %c0_17 = arith.constant 0 : index
    %c0_18 = arith.constant 0 : index
    %25 = vector.load %arg8[%c0_17, %c0_18] : memref<1x8xf32, #tpu.memory_space<vmem>>, vector<1x8xf32>
    tpu.vector_store %arg8[%c0_17, %c0_18], %24 {strides = array<i32>} : memref<1x8xf32, #tpu.memory_space<vmem>>, vector<1x8xf32>,
    return
  }
  func.func @transform_0(%arg0: i32) -> (i32, i32) {
    %c0_i32 = arith.constant 0 : i32
    %c0_i32_0 = arith.constant 0 : i32
    return %arg0, %c0_i32 : i32, i32
  }
  func.func @transform_1(%arg0: i32) -> (i32, i32) {
    %c0_i32 = arith.constant 0 : i32
    %c0_i32_0 = arith.constant 0 : i32
    %c0_i32_1 = arith.constant 0 : i32
    return %c0_i32, %c0_i32_0 : i32, i32
  }
  func.func @transform_2(%arg0: i32) -> (i32, i32) {
    %c0_i32 = arith.constant 0 : i32
    %c0_i32_0 = arith.constant 0 : i32
    %c0_i32_1 = arith.constant 0 : i32
    return %c0_i32, %c0_i32_0 : i32, i32
  }
  func.func @transform_3(%arg0: i32) -> (i32, i32) {
    %c0_i32 = arith.constant 0 : i32
    %c0_i32_0 = arith.constant 0 : i32
    %c0_i32_1 = arith.constant 0 : i32
    return %c0_i32, %c0_i32_0 : i32, i32
  }
  func.func @transform_4(%arg0: i32) -> (i32, i32) {
    %c0_i32 = arith.constant 0 : i32
    %c0_i32_0 = arith.constant 0 : i32
    %c0_i32_1 = arith.constant 0 : i32
    return %c0_i32, %c0_i32_0 : i32, i32
  }
  func.func @transform_5(%arg0: i32) -> (i32, i32) {
    %c0_i32 = arith.constant 0 : i32
    %c0_i32_0 = arith.constant 0 : i32
    %c0_i32_1 = arith.constant 0 : i32
    return %c0_i32, %c0_i32_0 : i32, i32
  }
  func.func @transform_6(%arg0: i32) -> (i32, i32) {
    %c0_i32 = arith.constant 0 : i32
    %c0_i32_0 = arith.constant 0 : i32
    %c0_i32_1 = arith.constant 0 : i32
    return %c0_i32, %c0_i32_0 : i32, i32
  }
  func.func @transform_7(%arg0: i32) -> (i32, i32) {
    %c0_i32 = arith.constant 0 : i32
    %c0_i32_0 = arith.constant 0 : i32
    return %c0_i32, %arg0 : i32, i32
  }
}

</mosaic_0001>

<llo_original>
// kernel: tpu_custom_call.1
$region0: #{tpu_custom_call.1}
  #allocation0 [shape = 'u32[]', space=smem, size = 0x4, offset = 0x4, fixed_abs, tag = 'smem constant byte address 0x4 - core index']
  #allocation1 [shape = 'u32[144,128]{1,0:T(1,128)}', space=vmem, size = 0x12000, scoped, tag = 'internal scratch']
  #allocation2 [shape = 'f32[1,1]{1,0:T(1,128)S(6)}', space=smem, size = 0x200, scoped, tag = 'scoped memory for tpu_custom_call.1']
  %s0 = inlined_call_operand.hbm [shape: f32[8,32], index: 0, kind: input, shape index: {}]
  %s1 = inlined_call_operand.hbm [shape: f32[32,256], index: 1, kind: input, shape index: {}]
  %s2 = inlined_call_operand.vmem [shape: f32[1,256], index: 2, kind: input, shape index: {}]
  %s3 = inlined_call_operand.hbm [shape: f32[256,128], index: 3, kind: input, shape index: {}]
  %s4 = inlined_call_operand.vmem [shape: f32[1,128], index: 4, kind: input, shape index: {}]
  %s5 = inlined_call_operand.vmem [shape: f32[1,128], index: 5, kind: input, shape index: {}]
  %s6 = inlined_call_operand.<no memory space> [shape: f32[1,1], index: 6, kind: input, shape index: {}]
  %s7 = inlined_call_operand.hbm [shape: f32[1,8], index: 7, kind: output, shape index: {}]
  %s8 = sld [smem:[#allocation0]]
  $region50: #{tpu_custom_call.1} parent=0
    _
  %s10 = ssub.s32 1, %s8
  %s11 = scalar_select 0, %s10, %s8
  %12 = sst [smem:[#allocation2]] %s6
  $region1: #{tpu_custom_call.1} parent=0
    #allocation3 [shape = 'u8[4096]{0}', space=vmem, size = 0x1000, scoped, tag = 'input window, operand 0, single buffered']
    #allocation4 [shape = 's32[1]{0}', space=sflag, size = 0x4, scoped, tag = 'scoped memory for tpu_custom_call.1']
    #allocation5 [shape = 's32[1]{0}', space=sflag, size = 0x4, scoped, tag = 'scoped memory for tpu_custom_call.1']
    #allocation6 [shape = 'u8[32768]{0}', space=vmem, size = 0x8000, scoped, tag = 'input window, operand 1, single buffered']
    #allocation7 [shape = 's32[1]{0}', space=sflag, size = 0x4, scoped, tag = 'scoped memory for tpu_custom_call.1']
    #allocation8 [shape = 'u8[131072]{0}', space=vmem, size = 0x20000, scoped, tag = 'input window, operand 3, single buffered']
    #allocation9 [shape = 'u8[512]{0}', space=vmem, size = 0x400, scoped, tag = 'output window, operand 0, single buffered']
    %13 = vsyncpa [#allocation4], 0
    %14 = vsyncpa [#allocation7], 0
    %15 = vsyncpa [#allocation5], 0
    // Predicated region
    $region2: #{tpu_custom_call.1} parent=1 // pred_check
      _
    $region3: #{tpu_custom_call.1} parent=1 // pred_check_branch
      %17 = sbr.rel (0) target = $region5
    $region4: #{tpu_custom_call.1} parent=1 // pred_region
      %s19 = ssub.s32 128, 128
      %20 = vsyncadd [#allocation4], %s19
      %s22 = sshll.u32 [#allocation3], 4
      %s23 = int_to_ptr.vmem [resolvable:$true] %s22
      %25 = dma.hbm_to_vmem [thread:$0]  %s0, 128, %s23, [#allocation4]
    $region5: #{tpu_custom_call.1} parent=1 // pred_fallthru
      _
    // Predicated region
    $region6: #{tpu_custom_call.1} parent=1 // pred_check
      _
    $region7: #{tpu_custom_call.1} parent=1 // pred_check_branch
      %27 = sbr.rel (0) target = $region9
    $region8: #{tpu_custom_call.1} parent=1 // pred_region
      %s29 = ssub.s32 1024, 1024
      %30 = vsyncadd [#allocation7], %s29
      %s31 = sshll.u32 [#allocation6], 4
      %s32 = int_to_ptr.vmem [resolvable:$true] %s31
      %37 = dma.hbm_to_vmem [thread:$0]  %s1, 1024, %s32, [#allocation7], 256, 256, 16
    $region9: #{tpu_custom_call.1} parent=1 // pred_fallthru
      _
    // Predicated region
    $region10: #{tpu_custom_call.1} parent=1 // pred_check
      _
    $region11: #{tpu_custom_call.1} parent=1 // pred_check_branch
      %39 = sbr.rel (0) target = $region13
    $region12: #{tpu_custom_call.1} parent=1 // pred_region
      _
    $region13: #{tpu_custom_call.1} parent=1 // pred_fallthru
      _
    // Predicated region
    $region14: #{tpu_custom_call.1} parent=1 // pred_check
      _
    $region15: #{tpu_custom_call.1} parent=1 // pred_check_branch
      %41 = sbr.rel (0) target = $region17
    $region16: #{tpu_custom_call.1} parent=1 // pred_region
      %s43 = ssub.s32 4096, 4096
      %44 = vsyncadd [#allocation7], %s43
      %s45 = sshll.u32 [#allocation8], 4
      %s46 = int_to_ptr.vmem [resolvable:$true] %s45
      %51 = dma.hbm_to_vmem [thread:$0]  %s3, 4096, %s46, [#allocation7], 128, 128, 8
    $region17: #{tpu_custom_call.1} parent=1 // pred_fallthru
      _
    // Predicated region
    $region18: #{tpu_custom_call.1} parent=1 // pred_check
      _
    $region19: #{tpu_custom_call.1} parent=1 // pred_check_branch
      %53 = sbr.rel (0) target = $region21
    $region20: #{tpu_custom_call.1} parent=1 // pred_region
      _
    $region21: #{tpu_custom_call.1} parent=1 // pred_fallthru
      _
    // Predicated region
    $region22: #{tpu_custom_call.1} parent=1 // pred_check
      _
    $region23: #{tpu_custom_call.1} parent=1 // pred_check_branch
      %55 = sbr.rel (0) target = $region25
    $region24: #{tpu_custom_call.1} parent=1 // pred_region
      _
    $region25: #{tpu_custom_call.1} parent=1 // pred_fallthru
      _
    // Predicated region
    $region26: #{tpu_custom_call.1} parent=1 // pred_check
      _
    $region27: #{tpu_custom_call.1} parent=1 // pred_check_branch
      %57 = sbr.rel (0) target = $region29
    $region28: #{tpu_custom_call.1} parent=1 // pred_region
      _
    $region29: #{tpu_custom_call.1} parent=1 // pred_fallthru
      _
    // Predicated region
    $region30: #{tpu_custom_call.1} parent=1 // pred_check
      _
    $region31: #{tpu_custom_call.1} parent=1 // pred_check_branch
      %59 = sbr.rel (0) target = $region33
    $region32: #{tpu_custom_call.1} parent=1 // pred_region
      %60 = dma.done [#allocation4], 128
    $region33: #{tpu_custom_call.1} parent=1 // pred_fallthru
      _
    // Predicated region
    $region34: #{tpu_custom_call.1} parent=1 // pred_check
      _
    $region35: #{tpu_custom_call.1} parent=1 // pred_check_branch
      %62 = sbr.rel (0) target = $region37
    $region36: #{tpu_custom_call.1} parent=1 // pred_region
      %63 = dma.done [#allocation7], 1024
    $region37: #{tpu_custom_call.1} parent=1 // pred_fallthru
      _
    // Predicated region
    $region38: #{tpu_custom_call.1} parent=1 // pred_check
      _
    $region39: #{tpu_custom_call.1} parent=1 // pred_check_branch
      %65 = sbr.rel (0) target = $region41
    $region40: #{tpu_custom_call.1} parent=1 // pred_region
      %66 = dma.done [#allocation7], 4096
    $region41: #{tpu_custom_call.1} parent=1 // pred_fallthru
      _
    %v67 = vld [vmem:[#allocation3] sm:$0xff]
    %v68 = vld [vmem:[#allocation6] sm:$0xff]
    %v69 = vld [vmem:[#allocation6 + $0x8] sm:$0xff]
    %v70 = vld [vmem:[#allocation6 + $0x10] sm:$0xff]
    %v71 = vld [vmem:[#allocation6 + $0x18] sm:$0xff]
    %v72 = vld [vmem:[#allocation6 + $0x20] sm:$0xff]
    %v73 = vld [vmem:[#allocation6 + $0x28] sm:$0xff]
    %v74 = vld [vmem:[#allocation6 + $0x30] sm:$0xff]
    %v75 = vld [vmem:[#allocation6 + $0x38] sm:$0xff]
    %v76 = vld [vmem:[%s2] sm:$0x3]
    %v78 = vlaneseq
    %v79 = vshrl.u32 %v78, 7
    %v80 = vsub.s32 0, %v79
    %v81 = vrot.slane %v76, %v80
    %v82 = vlaneseq
    %v83 = vshrl.u32 %v82, 7
    %v84 = vsub.s32 1, %v83
    %v85 = vrot.slane %v76, %v84
    %vm88 = vcmask 261120
    %v90 = vsel %vm88, %v67, 0
    %92 = vmatprep.subr.mxu0 %v69
    %93 = vmatpush1.msra.mxu0 %v68
    %94 = vmatprep.subr.mxu0 %v71
    %95 = vmatpush1.msra.mxu0 %v70
    %96 = vmatprep.subr.mxu0 %v73
    %97 = vmatpush1.msra.mxu0 %v72
    %98 = vmatprep.subr.mxu0 %v75
    %99 = vmatpush1.msra.mxu0 %v74
    %100 = vmatprep.subr.mxu0 0.0
    %101 = vmatpush1.msra.mxu0 0.0
    %102 = vmatprep.subr.mxu0 0.0
    %103 = vmatpush1.msra.mxu0 0.0
    %104 = vmatprep.subr.mxu0 0.0
    %105 = vmatpush1.msra.mxu0 0.0
    %106 = vmatprep.subr.mxu0 0.0
    %107 = vmatpush1.msra.mxu0 0.0
    %108 = vmatprep.subr.mxu0 0.0
    %109 = vmatpush1.msra.mxu0 0.0
    %110 = vmatprep.subr.mxu0 0.0
    %111 = vmatpush1.msra.mxu0 0.0
    %112 = vmatprep.subr.mxu0 0.0
    %113 = vmatpush1.msra.mxu0 0.0
    %114 = vmatprep.subr.mxu0 0.0
    %115 = vmatpush1.msra.mxu0 0.0
    %116 = vmatprep.subr.mxu0 0.0
    %117 = vmatpush1.msra.mxu0 0.0
    %118 = vmatprep.subr.mxu0 0.0
    %119 = vmatpush1.msra.mxu0 0.0
    %120 = vmatprep.subr.mxu0 0.0
    %121 = vmatpush1.msra.mxu0 0.0
    %122 = vmatprep.subr.mxu0 0.0
    %123 = vmatpush1.msra.mxu0 0.0
    %124 = vmatprep.subr.mxu0 0.0
    %125 = vmatpush1.msra.mxu0 0.0
    %126 = vmatprep.subr.mxu0 0.0
    %127 = vmatpush1.msra.mxu0 0.0
    %128 = vmatprep.subr.mxu0 0.0
    %129 = vmatpush1.msra.mxu0 0.0
    %130 = vmatprep.subr.mxu0 0.0
    %131 = vmatpush1.msra.mxu0 0.0
    %132 = vmatprep.subr.mxu0 0.0
    %133 = vmatpush1.msra.mxu0 0.0
    %134 = vmatprep.subr.mxu0 0.0
    %135 = vmatpush1.msra.mxu0 0.0
    %136 = vmatprep.subr.mxu0 0.0
    %137 = vmatpush1.msra.mxu0 0.0
    %138 = vmatprep.subr.mxu0 0.0
    %139 = vmatpush1.msra.mxu0 0.0
    %140 = vmatprep.subr.mxu0 0.0
    %141 = vmatpush1.msra.mxu0 0.0
    %142 = vmatprep.subr.mxu0 0.0
    %143 = vmatpush1.msra.mxu0 0.0
    %144 = vmatprep.subr.mxu0 0.0
    %145 = vmatpush1.msra.mxu0 0.0
    %146 = vmatprep.subr.mxu0 0.0
    %147 = vmatpush1.msra.mxu0 0.0
    %148 = vmatprep.subr.mxu0 0.0
    %149 = vmatpush1.msra.mxu0 0.0
    %150 = vmatprep.subr.mxu0 0.0
    %151 = vmatpush1.msra.mxu0 0.0
    %152 = vmatprep.subr.mxu0 0.0
    %153 = vmatpush1.msra.mxu0 0.0
    %154 = vmatprep.subr.mxu0 0.0
    %155 = vmatpush1.msra.mxu0 0.0
    %156 = vmatprep.mubr.f32.mxu0 0.0
    %157 = vmatmul.mubr.f32.gmra.mrb[0].mxu0 %v90
    %v158 = vpop.f32.mrb[0].mxu0
    %v159 = vadd.f32 %v81, %v158
    %v160 = vpop.f32.mrb[0].mxu0
    %v161 = vadd.f32 %v85, %v160
    %162 = vdwg.mxu0
    %v163 = vmul.f32 %v159, 0.01
    %v164 = vmul.f32 %v161, 0.01
    %v165 = vmax.f32 %v159, %v163
    %v166 = vmax.f32 %v161, %v164
    %v167 = vld [vmem:[#allocation8] sm:$0xff]
    %v168 = vld [vmem:[#allocation8 + $0x8] sm:$0xff]
    %v169 = vld [vmem:[#allocation8 + $0x10] sm:$0xff]
    %v170 = vld [vmem:[#allocation8 + $0x18] sm:$0xff]
    %v171 = vld [vmem:[#allocation8 + $0x20] sm:$0xff]
    %v172 = vld [vmem:[#allocation8 + $0x28] sm:$0xff]
    %v173 = vld [vmem:[#allocation8 + $0x30] sm:$0xff]
    %v174 = vld [vmem:[#allocation8 + $0x38] sm:$0xff]
    %v175 = vld [vmem:[#allocation8 + $0x40] sm:$0xff]
    %v176 = vld [vmem:[#allocation8 + $0x48] sm:$0xff]
    %v177 = vld [vmem:[#allocation8 + $0x50] sm:$0xff]
    %v178 = vld [vmem:[#allocation8 + $0x58] sm:$0xff]
    %v179 = vld [vmem:[#allocation8 + $0x60] sm:$0xff]
    %v180 = vld [vmem:[#allocation8 + $0x68] sm:$0xff]
    %v181 = vld [vmem:[#allocation8 + $0x70] sm:$0xff]
    %v182 = vld [vmem:[#allocation8 + $0x78] sm:$0xff]
    %v183 = vld [vmem:[#allocation8 + $0x80] sm:$0xff]
    %v184 = vld [vmem:[#allocation8 + $0x88] sm:$0xff]
    %v185 = vld [vmem:[#allocation8 + $0x90] sm:$0xff]
    %v186 = vld [vmem:[#allocation8 + $0x98] sm:$0xff]
    %v187 = vld [vmem:[#allocation8 + $0xa0] sm:$0xff]
    %v188 = vld [vmem:[#allocation8 + $0xa8] sm:$0xff]
    %v189 = vld [vmem:[#allocation8 + $0xb0] sm:$0xff]
    %v190 = vld [vmem:[#allocation8 + $0xb8] sm:$0xff]
    %v191 = vld [vmem:[#allocation8 + $0xc0] sm:$0xff]
    %v192 = vld [vmem:[#allocation8 + $0xc8] sm:$0xff]
    %v193 = vld [vmem:[#allocation8 + $0xd0] sm:$0xff]
    %v194 = vld [vmem:[#allocation8 + $0xd8] sm:$0xff]
    %v195 = vld [vmem:[#allocation8 + $0xe0] sm:$0xff]
    %v196 = vld [vmem:[#allocation8 + $0xe8] sm:$0xff]
    %v197 = vld [vmem:[#allocation8 + $0xf0] sm:$0xff]
    %v198 = vld [vmem:[#allocation8 + $0xf8] sm:$0xff]
    %v199 = vld [vmem:[%s4] sm:$0x1]
    %v201 = vlaneseq
    %v202 = vshrl.u32 %v201, 7
    %v203 = vsub.s32 0, %v202
    %v204 = vrot.slane %v199, %v203
    %206 = vmatprep.subr.mxu0 0.0
    %207 = vmatpush1.msra.mxu0 %v167
    %208 = vmatprep.subr.mxu0 0.0
    %209 = vmatpush1.msra.mxu0 %v168
    %210 = vmatprep.subr.mxu0 0.0
    %211 = vmatpush1.msra.mxu0 %v169
    %212 = vmatprep.subr.mxu0 0.0
    %213 = vmatpush1.msra.mxu0 %v170
    %214 = vmatprep.subr.mxu0 0.0
    %215 = vmatpush1.msra.mxu0 %v171
    %216 = vmatprep.subr.mxu0 0.0
    %217 = vmatpush1.msra.mxu0 %v172
    %218 = vmatprep.subr.mxu0 0.0
    %219 = vmatpush1.msra.mxu0 %v173
    %220 = vmatprep.subr.mxu0 0.0
    %221 = vmatpush1.msra.mxu0 %v174
    %222 = vmatprep.subr.mxu0 0.0
    %223 = vmatpush1.msra.mxu0 %v175
    %224 = vmatprep.subr.mxu0 0.0
    %225 = vmatpush1.msra.mxu0 %v176
    %226 = vmatprep.subr.mxu0 0.0
    %227 = vmatpush1.msra.mxu0 %v177
    %228 = vmatprep.subr.mxu0 0.0
    %229 = vmatpush1.msra.mxu0 %v178
    %230 = vmatprep.subr.mxu0 0.0
    %231 = vmatpush1.msra.mxu0 %v179
    %232 = vmatprep.subr.mxu0 0.0
    %233 = vmatpush1.msra.mxu0 %v180
    %234 = vmatprep.subr.mxu0 0.0
    %235 = vmatpush1.msra.mxu0 %v181
    %236 = vmatprep.subr.mxu0 0.0
    %237 = vmatpush1.msra.mxu0 %v182
    %238 = vmatprep.subr.mxu0 0.0
    %239 = vmatpush1.msra.mxu0 %v183
    %240 = vmatprep.subr.mxu0 0.0
    %241 = vmatpush1.msra.mxu0 %v184
    %242 = vmatprep.subr.mxu0 0.0
    %243 = vmatpush1.msra.mxu0 %v185
    %244 = vmatprep.subr.mxu0 0.0
    %245 = vmatpush1.msra.mxu0 %v186
    %246 = vmatprep.subr.mxu0 0.0
    %247 = vmatpush1.msra.mxu0 %v187
    %248 = vmatprep.subr.mxu0 0.0
    %249 = vmatpush1.msra.mxu0 %v188
    %250 = vmatprep.subr.mxu0 0.0
    %251 = vmatpush1.msra.mxu0 %v189
    %252 = vmatprep.subr.mxu0 0.0
    %253 = vmatpush1.msra.mxu0 %v190
    %254 = vmatprep.subr.mxu0 0.0
    %255 = vmatpush1.msra.mxu0 %v191
    %256 = vmatprep.subr.mxu0 0.0
    %257 = vmatpush1.msra.mxu0 %v192
    %258 = vmatprep.subr.mxu0 0.0
    %259 = vmatpush1.msra.mxu0 %v193
    %260 = vmatprep.subr.mxu0 0.0
    %261 = vmatpush1.msra.mxu0 %v194
    %262 = vmatprep.subr.mxu0 0.0
    %263 = vmatpush1.msra.mxu0 %v195
    %264 = vmatprep.subr.mxu0 0.0
    %265 = vmatpush1.msra.mxu0 %v196
    %266 = vmatprep.subr.mxu0 0.0
    %267 = vmatpush1.msra.mxu0 %v197
    %268 = vmatprep.subr.mxu0 0.0
    %269 = vmatpush1.msra.mxu0 %v198
    %270 = vmatprep.mubr.f32.mxu0 %v166
    %271 = vmatmul.mubr.f32.gmra.mrb[0].mxu0 %v165
    %v272 = vpop.f32.mrb[0].mxu0
    %v273 = vadd.f32 %v204, %v272
    %v274 = vpop.f32.mrb[0].mxu0
    %275 = vdwg.mxu0
    %v276 = vmul.f32 %v273, 0.01
    %v277 = vmax.f32 %v273, %v276
    %v278 = vld [vmem:[%s5] sm:$0x1]
    %v280 = vlaneseq
    %v281 = vshrl.u32 %v280, 7
    %v282 = vsub.s32 0, %v281
    %v283 = vrot.slane %v278, %v282
    %v285 = vmul.f32 %v277, %v283
    %286 = vadd.xlane.f32.xlu0 %v285
    %v287 = vpop.xlane.xlu0 %286
    %s288 = sld [smem:[#allocation2]]
    %v289 = vstv %s288
    %v290 = vadd.f32 %v287, %v289
    %v292 = vlaneseq
    %v293 = vand.u32 %v292, 127
    %v294 = vlaneseq
    %v295 = vshrl.u32 %v294, 7
    %v296 = vsub.s32 %v293, %v295
    %v297 = vrot.slane %v290, %v296
    %vm299 = vcmask 57344
    %300 = vst.msk [vmem:[#allocation9] sm:$0x1] %vm299, %v297
    // Predicated region
    $region42: #{tpu_custom_call.1} parent=1 // pred_check
      _
    $region43: #{tpu_custom_call.1} parent=1 // pred_check_branch
      %302 = sbr.rel (0) target = $region45
    $region44: #{tpu_custom_call.1} parent=1 // pred_region
      %s304 = ssub.s32 16, 16
      %305 = vsyncadd [#allocation5], %s304
      %s307 = sshll.u32 [#allocation9], 4
      %s308 = int_to_ptr.vmem [resolvable:$true] %s307
      %310 = dma.vmem_to_hbm [thread:$0]  %s308, 16, %s7, [#allocation5]
    $region45: #{tpu_custom_call.1} parent=1 // pred_fallthru
      _
    // Predicated region
    $region46: #{tpu_custom_call.1} parent=1 // pred_check
      _
    $region47: #{tpu_custom_call.1} parent=1 // pred_check_branch
      %312 = sbr.rel (0) target = $region49
    $region48: #{tpu_custom_call.1} parent=1 // pred_region
      %313 = dma.done [#allocation5], 16
    $region49: #{tpu_custom_call.1} parent=1 // pred_fallthru
      _
    %314 = vsyncpa [#allocation4], 1
    %315 = vsyncpa [#allocation7], 1
    %316 = vsyncpa [#allocation5], 1

</llo_original>
